<compile_context>
chip_gen: v6e
topology: v6e:2x2x1
jax: 0.10.0
libtpu: 0.0.40
codegen_flags: <defaults>
</compile_context>

<pallas_src>
from functools import partial

import jax
import jax.numpy as jnp
from jax import lax
from jax.experimental import pallas as pl
from jax.experimental.pallas import tpu as pltpu


def _round_up(x, m):
    return (x + m - 1) // m * m


def lstm_tagger_kernel(x_ref, w_ref, out_ref, *,
                       seq_len, embed_dim, hidden_dim, num_labels,
                       off_wih, off_whh, off_b, off_wtag, off_btag):
    """Whole forward pass in one kernel invocation (everything VMEM-resident).

    x_ref  : (S, E)      embeddings (batch = 1, row index = timestep)
    w_ref  : (rows, 4H)  packed parameter slab:
               [off_wih : off_wih+E]  W_ih^T  (E, 4H)   gate order i,f,g,o
               [off_whh : off_whh+H]  W_hh^T  (H, 4H)
               [off_b]                b_ih + b_hh        (4H,)
               [off_wtag: off_wtag+H] hidden2tag W^T padded to 4H lanes
               [off_btag]             hidden2tag b  padded to 4H lanes
    out_ref: (1, L)      log-softmax tag scores
    """
    S, E, H, L = seq_len, embed_dim, hidden_dim, num_labels

    wih = w_ref[off_wih:off_wih + E, :]          # (E, 4H)
    whh = w_ref[off_whh:off_whh + H, :]          # (H, 4H)
    bias = w_ref[off_b:off_b + 1, :]             # (1, 4H)
    wtag = w_ref[off_wtag:off_wtag + H, :]       # (H, 4H)  lanes >= L are zero
    btag = w_ref[off_btag:off_btag + 1, :]       # (1, 4H)  lanes >= L are zero

    # ---- Input projection hoisted out of the recurrence (one MXU matmul,
    # off the serial critical path); bias folded in once. ------------------
    xw = jnp.dot(x_ref[...], wih,
                 preferred_element_type=jnp.float32) + bias     # (S, 4H)

    # Hoisted identity mask: turns the (1,H) hidden row into an (H,1) sublane
    # column with a VPU multiply + XLU lane reduce (no MXU round trip).
    row_ids = lax.broadcasted_iota(jnp.int32, (H, H), 0)
    col_ids = lax.broadcasted_iota(jnp.int32, (H, H), 1)
    eye = (row_ids == col_ids).astype(jnp.float32)              # (H, H)

    def to_col(v_row):                    # (1, H) -> (H, 1)
        return jnp.sum(eye * v_row, axis=1, keepdims=True)

    h = jnp.zeros((1, H), jnp.float32)
    c = jnp.zeros((1, H), jnp.float32)

    # ---- Recurrence: fully unrolled (S small & static). Per-step hidden
    # matvec stays on VPU/XLU: h_col(H,1) * W_hh(H,4H) -> sublane reduce.
    # TODO(synk): for long sequences switch to lax.fori_loop + pl.ds indexing.
    for t in range(S):
        if t == 0:
            z = xw[0:1, :]                                       # h0 == 0
        else:
            h_col = to_col(h)                                    # (H, 1)
            zh = jnp.sum(h_col * whh, axis=0, keepdims=True)     # (1, 4H)
            z = xw[t:t + 1, :] + zh

        sg = jax.nn.sigmoid(z)             # one full-vreg sigmoid (i,f,_,o)
        i_g = sg[:, 0:H]
        f_g = sg[:, H:2 * H]
        o_g = sg[:, 3 * H:4 * H]
        g_g = jnp.tanh(z[:, 2 * H:3 * H])  # quarter-width tanh for g

        c = f_g * c + i_g * g_g
        h = o_g * jnp.tanh(c)

    # ---- hidden2tag on the last hidden state (VPU matvec), log_softmax. ---
    h_col = to_col(h)
    tag_full = jnp.sum(h_col * wtag, axis=0, keepdims=True) + btag   # (1, 4H)
    tag = tag_full[:, 0:L]                                           # (1, L)
    m = jnp.max(tag, axis=1, keepdims=True)
    zc = tag - m
    lse = jnp.log(jnp.sum(jnp.exp(zc), axis=1, keepdims=True))
    out_ref[...] = zc - lse


def model_forward(embeds, w_ih, w_hh, b_ih, b_hh, w_tag, b_tag):
    """embeds: (S, B, E) f32 (B must be 1, as forced by Model.init_hidden()).

    Weights are raw PyTorch layout:
      w_ih (4H, E), w_hh (4H, H), b_ih (4H,), b_hh (4H,),
      w_tag (L, H), b_tag (L,), gate order i, f, g, o.
    Returns (B, L) log-probabilities.
    """
    S, B, E = embeds.shape
    H = w_hh.shape[1]
    L = w_tag.shape[0]
    G = 4 * H
    assert B == 1, "Model.init_hidden() hard-codes batch size 1"
    assert G % 128 == 0 and L <= G

    # ---- Pack every parameter into one lane-dense slab (1 DMA). ----------
    off_wih = 0
    off_whh = _round_up(off_wih + E, 8)
    off_b = _round_up(off_whh + H, 8)
    off_wtag = _round_up(off_b + 1, 8)
    off_btag = _round_up(off_wtag + H, 8)
    rows = _round_up(off_btag + 1, 8)

    slab = jnp.zeros((rows, G), jnp.float32)
    slab = slab.at[off_wih:off_wih + E, :].set(w_ih.T)           # (E, 4H)
    slab = slab.at[off_whh:off_whh + H, :].set(w_hh.T)           # (H, 4H)
    slab = slab.at[off_b, :].set(b_ih + b_hh)                    # fused bias
    slab = slab.at[off_wtag:off_wtag + H, 0:L].set(w_tag.T)      # (H, L) pad
    slab = slab.at[off_btag, 0:L].set(b_tag)                     # (L,)  pad

    x2d = embeds.reshape(S * B, E)                               # (S, E)

    kernel = partial(lstm_tagger_kernel, seq_len=S, embed_dim=E,
                     hidden_dim=H, num_labels=L,
                     off_wih=off_wih, off_whh=off_whh, off_b=off_b,
                     off_wtag=off_wtag, off_btag=off_btag)

    vmem = pl.BlockSpec(memory_space=pltpu.MemorySpace.VMEM)
    return pl.pallas_call(
        kernel,
        out_shape=jax.ShapeDtypeStruct((B, L), jnp.float32),
        in_specs=[vmem, vmem],     # 2 DMAs total: embeddings + packed slab
        out_specs=vmem,
    )(x2d, slab)


def reference_forward(embeds, w_ih, w_hh, b_ih, b_hh, w_tag, b_tag):
    """Pure-JAX reference using the raw PyTorch-layout weights."""
    S, B, E = embeds.shape
    H = w_hh.shape[1]
    h = jnp.zeros((B, H), jnp.float32)
    c = jnp.zeros((B, H), jnp.float32)
    for t in range(S):
        z = embeds[t] @ w_ih.T + h @ w_hh.T + b_ih + b_hh
        i = jax.nn.sigmoid(z[:, 0:H])
        f = jax.nn.sigmoid(z[:, H:2 * H])
        g = jnp.tanh(z[:, 2 * H:3 * H])
        o = jax.nn.sigmoid(z[:, 3 * H:4 * H])
        c = f * c + i * g
        h = o * jnp.tanh(c)
    tag = h @ w_tag.T + b_tag
    return jax.nn.log_softmax(tag, axis=1)


if __name__ == "__main__":
    # Small hyperparameters consistent with the module's __init__.
    num_labels = 4
    embeddings_size = 32
    hidden_dim = 32
    seq_len = 8
    batch = 1          # forced by init_hidden() -> (1, 1, hidden_dim)

    key = jax.random.PRNGKey(0)
    k_x, k_wih, k_whh, k_bih, k_bhh, k_wt, k_bt = jax.random.split(key, 7)
    bound = 1.0 / jnp.sqrt(jnp.float32(hidden_dim))

    # PyTorch nn.LSTM weight layout: weight_ih (4H, E), weight_hh (4H, H),
    # gate order along the 4H axis: i, f, g, o.
    w_ih = jax.random.uniform(k_wih, (4 * hidden_dim, embeddings_size),
                              jnp.float32, -bound, bound)
    w_hh = jax.random.uniform(k_whh, (4 * hidden_dim, hidden_dim),
                              jnp.float32, -bound, bound)
    b_ih = jax.random.uniform(k_bih, (4 * hidden_dim,), jnp.float32,
                              -bound, bound)
    b_hh = jax.random.uniform(k_bhh, (4 * hidden_dim,), jnp.float32,
                              -bound, bound)

    # hidden2tag: Linear(hidden_dim, num_labels)
    w_tag = jax.random.uniform(k_wt, (num_labels, hidden_dim),
                               jnp.float32, -bound, bound)
    b_tag = jax.random.uniform(k_bt, (num_labels,), jnp.float32,
                               -bound, bound)

    embeds = jax.random.normal(k_x, (seq_len, batch, embeddings_size),
                               jnp.float32)

    out = model_forward(embeds, w_ih, w_hh, b_ih, b_hh, w_tag, b_tag)
    out = jax.block_until_ready(out)

    ref = reference_forward(embeds, w_ih, w_hh, b_ih, b_hh, w_tag, b_tag)
    assert out.shape == (batch, num_labels)
    assert jnp.allclose(out, ref, rtol=1e-4, atol=1e-4), (out, ref)

    print("KERNEL_OK")
</pallas_src>

<mosaic_0001>
module attributes {stable_mosaic.version = 11 : i64} {
  func.func @lstm_tagger_kernel(%arg0: memref<8x32xf32, #tpu.memory_space<vmem>>, %arg1: memref<112x128xf32, #tpu.memory_space<vmem>>, %arg2: memref<1x4xf32, #tpu.memory_space<vmem>>) attributes {dimension_semantics = [], scalar_prefetch = 0 : i64, scratch_operands = 0 : i64, tpu.core_type = #tpu.core_type<tc>} {
    %c0 = arith.constant 0 : index
    %c0_0 = arith.constant 0 : index
    %0 = vector.load %arg1[%c0, %c0_0] : memref<112x128xf32, #tpu.memory_space<vmem>>, vector<32x128xf32>
    %c32 = arith.constant 32 : index
    %c0_1 = arith.constant 0 : index
    %1 = vector.load %arg1[%c32, %c0_1] : memref<112x128xf32, #tpu.memory_space<vmem>>, vector<32x128xf32>
    %c64 = arith.constant 64 : index
    %c0_2 = arith.constant 0 : index
    %2 = vector.load %arg1[%c64, %c0_2] : memref<112x128xf32, #tpu.memory_space<vmem>>, vector<1x128xf32>
    %c72 = arith.constant 72 : index
    %c0_3 = arith.constant 0 : index
    %3 = vector.load %arg1[%c72, %c0_3] : memref<112x128xf32, #tpu.memory_space<vmem>>, vector<32x128xf32>
    %c104 = arith.constant 104 : index
    %c0_4 = arith.constant 0 : index
    %4 = vector.load %arg1[%c104, %c0_4] : memref<112x128xf32, #tpu.memory_space<vmem>>, vector<1x128xf32>
    %c0_5 = arith.constant 0 : index
    %c0_6 = arith.constant 0 : index
    %5 = vector.load %arg0[%c0_5, %c0_6] : memref<8x32xf32, #tpu.memory_space<vmem>>, vector<8x32xf32>
    %cst = arith.constant dense<0.000000e+00> : vector<8x128xf32>
    %6 = tpu.matmul %5, %0, %cst {dimension_numbers = #tpu.dot_dimension_numbers<[1], [0], [0], [1], [0, 0, 1, 1], [], []>} : vector<8x32xf32>, vector<32x128xf32>, vector<8x128xf32> -> vector<8x128xf32>
    %7 = vector.broadcast %2 : vector<1x128xf32> to vector<8x128xf32>
    %8 = arith.addf %6, %7 : vector<8x128xf32>
    %9 = tpu.iota {dimensions = array<i32: 0>} : vector<32x32xi32>
    %10 = tpu.iota {dimensions = array<i32: 1>} : vector<32x32xi32>
    %11 = arith.cmpi eq, %9, %10 : vector<32x32xi32>
    %12 = arith.extui %11 : vector<32x32xi1> to vector<32x32xi32>
    %13 = arith.sitofp %12 : vector<32x32xi32> to vector<32x32xf32>
    %cst_7 = arith.constant 0.000000e+00 : f32
    %14 = vector.broadcast %cst_7 : f32 to vector<1x32xf32>
    %15 = vector.extract_strided_slice %8 {offsets = [0, 0], sizes = [1, 128], strides = [1, 1]} : vector<8x128xf32> to vector<1x128xf32>
    %16 = arith.negf %15 : vector<1x128xf32>
    %17 = math.exp %16 : vector<1x128xf32>
    %cst_8 = arith.constant 1.000000e+00 : f32
    %18 = vector.broadcast %cst_8 : f32 to vector<1x128xf32>
    %19 = arith.addf %18, %17 : vector<1x128xf32>
    %20 = arith.divf %18, %19 : vector<1x128xf32>
    %21 = vector.extract_strided_slice %20 {offsets = [0, 0], sizes = [1, 32], strides = [1, 1]} : vector<1x128xf32> to vector<1x32xf32>
    %22 = vector.extract_strided_slice %20 {offsets = [0, 32], sizes = [1, 32], strides = [1, 1]} : vector<1x128xf32> to vector<1x32xf32>
    %23 = vector.extract_strided_slice %20 {offsets = [0, 96], sizes = [1, 32], strides = [1, 1]} : vector<1x128xf32> to vector<1x32xf32>
    %24 = vector.extract_strided_slice %15 {offsets = [0, 64], sizes = [1, 32], strides = [1, 1]} : vector<1x128xf32> to vector<1x32xf32>
    %25 = math.tanh %24 : vector<1x32xf32>
    %26 = arith.mulf %22, %14 : vector<1x32xf32>
    %27 = arith.mulf %21, %25 : vector<1x32xf32>
    %28 = arith.addf %26, %27 : vector<1x32xf32>
    %29 = math.tanh %28 : vector<1x32xf32>
    %30 = arith.mulf %23, %29 : vector<1x32xf32>
    %31 = vector.broadcast %30 : vector<1x32xf32> to vector<32x32xf32>
    %32 = arith.mulf %13, %31 : vector<32x32xf32>
    %cst_9 = arith.constant dense<0.000000e+00> : vector<32xf32>
    %33 = vector.multi_reduction <add>, %32, %cst_9 [1] : vector<32x32xf32> to vector<32xf32>
    %34 = vector.shape_cast %33 : vector<32xf32> to vector<32x1xf32>
    %35 = vector.broadcast %34 : vector<32x1xf32> to vector<32x128xf32>
    %36 = arith.mulf %35, %1 : vector<32x128xf32>
    %cst_10 = arith.constant dense<0.000000e+00> : vector<128xf32>
    %37 = vector.multi_reduction <add>, %36, %cst_10 [0] : vector<32x128xf32> to vector<128xf32>
    %38 = vector.shape_cast %37 : vector<128xf32> to vector<1x128xf32>
    %39 = vector.extract_strided_slice %8 {offsets = [1, 0], sizes = [1, 128], strides = [1, 1]} : vector<8x128xf32> to vector<1x128xf32>
    %40 = arith.addf %39, %38 : vector<1x128xf32>
    %41 = arith.negf %40 : vector<1x128xf32>
    %42 = math.exp %41 : vector<1x128xf32>
    %cst_11 = arith.constant 1.000000e+00 : f32
    %43 = vector.broadcast %cst_11 : f32 to vector<1x128xf32>
    %44 = arith.addf %43, %42 : vector<1x128xf32>
    %45 = arith.divf %43, %44 : vector<1x128xf32>
    %46 = vector.extract_strided_slice %45 {offsets = [0, 0], sizes = [1, 32], strides = [1, 1]} : vector<1x128xf32> to vector<1x32xf32>
    %47 = vector.extract_strided_slice %45 {offsets = [0, 32], sizes = [1, 32], strides = [1, 1]} : vector<1x128xf32> to vector<1x32xf32>
    %48 = vector.extract_strided_slice %45 {offsets = [0, 96], sizes = [1, 32], strides = [1, 1]} : vector<1x128xf32> to vector<1x32xf32>
    %49 = vector.extract_strided_slice %40 {offsets = [0, 64], sizes = [1, 32], strides = [1, 1]} : vector<1x128xf32> to vector<1x32xf32>
    %50 = math.tanh %49 : vector<1x32xf32>
    %51 = arith.mulf %47, %28 : vector<1x32xf32>
    %52 = arith.mulf %46, %50 : vector<1x32xf32>
    %53 = arith.addf %51, %52 : vector<1x32xf32>
    %54 = math.tanh %53 : vector<1x32xf32>
    %55 = arith.mulf %48, %54 : vector<1x32xf32>
    %56 = vector.broadcast %55 : vector<1x32xf32> to vector<32x32xf32>
    %57 = arith.mulf %13, %56 : vector<32x32xf32>
    %cst_12 = arith.constant dense<0.000000e+00> : vector<32xf32>
    %58 = vector.multi_reduction <add>, %57, %cst_12 [1] : vector<32x32xf32> to vector<32xf32>
    %59 = vector.shape_cast %58 : vector<32xf32> to vector<32x1xf32>
    %60 = vector.broadcast %59 : vector<32x1xf32> to vector<32x128xf32>
    %61 = arith.mulf %60, %1 : vector<32x128xf32>
    %cst_13 = arith.constant dense<0.000000e+00> : vector<128xf32>
    %62 = vector.multi_reduction <add>, %61, %cst_13 [0] : vector<32x128xf32> to vector<128xf32>
    %63 = vector.shape_cast %62 : vector<128xf32> to vector<1x128xf32>
    %64 = vector.extract_strided_slice %8 {offsets = [2, 0], sizes = [1, 128], strides = [1, 1]} : vector<8x128xf32> to vector<1x128xf32>
    %65 = arith.addf %64, %63 : vector<1x128xf32>
    %66 = arith.negf %65 : vector<1x128xf32>
    %67 = math.exp %66 : vector<1x128xf32>
    %cst_14 = arith.constant 1.000000e+00 : f32
    %68 = vector.broadcast %cst_14 : f32 to vector<1x128xf32>
    %69 = arith.addf %68, %67 : vector<1x128xf32>
    %70 = arith.divf %68, %69 : vector<1x128xf32>
    %71 = vector.extract_strided_slice %70 {offsets = [0, 0], sizes = [1, 32], strides = [1, 1]} : vector<1x128xf32> to vector<1x32xf32>
    %72 = vector.extract_strided_slice %70 {offsets = [0, 32], sizes = [1, 32], strides = [1, 1]} : vector<1x128xf32> to vector<1x32xf32>
    %73 = vector.extract_strided_slice %70 {offsets = [0, 96], sizes = [1, 32], strides = [1, 1]} : vector<1x128xf32> to vector<1x32xf32>
    %74 = vector.extract_strided_slice %65 {offsets = [0, 64], sizes = [1, 32], strides = [1, 1]} : vector<1x128xf32> to vector<1x32xf32>
    %75 = math.tanh %74 : vector<1x32xf32>
    %76 = arith.mulf %72, %53 : vector<1x32xf32>
    %77 = arith.mulf %71, %75 : vector<1x32xf32>
    %78 = arith.addf %76, %77 : vector<1x32xf32>
    %79 = math.tanh %78 : vector<1x32xf32>
    %80 = arith.mulf %73, %79 : vector<1x32xf32>
    %81 = vector.broadcast %80 : vector<1x32xf32> to vector<32x32xf32>
    %82 = arith.mulf %13, %81 : vector<32x32xf32>
    %cst_15 = arith.constant dense<0.000000e+00> : vector<32xf32>
    %83 = vector.multi_reduction <add>, %82, %cst_15 [1] : vector<32x32xf32> to vector<32xf32>
    %84 = vector.shape_cast %83 : vector<32xf32> to vector<32x1xf32>
    %85 = vector.broadcast %84 : vector<32x1xf32> to vector<32x128xf32>
    %86 = arith.mulf %85, %1 : vector<32x128xf32>
    %cst_16 = arith.constant dense<0.000000e+00> : vector<128xf32>
    %87 = vector.multi_reduction <add>, %86, %cst_16 [0] : vector<32x128xf32> to vector<128xf32>
    %88 = vector.shape_cast %87 : vector<128xf32> to vector<1x128xf32>
    %89 = vector.extract_strided_slice %8 {offsets = [3, 0], sizes = [1, 128], strides = [1, 1]} : vector<8x128xf32> to vector<1x128xf32>
    %90 = arith.addf %89, %88 : vector<1x128xf32>
    %91 = arith.negf %90 : vector<1x128xf32>
    %92 = math.exp %91 : vector<1x128xf32>
    %cst_17 = arith.constant 1.000000e+00 : f32
    %93 = vector.broadcast %cst_17 : f32 to vector<1x128xf32>
    %94 = arith.addf %93, %92 : vector<1x128xf32>
    %95 = arith.divf %93, %94 : vector<1x128xf32>
    %96 = vector.extract_strided_slice %95 {offsets = [0, 0], sizes = [1, 32], strides = [1, 1]} : vector<1x128xf32> to vector<1x32xf32>
    %97 = vector.extract_strided_slice %95 {offsets = [0, 32], sizes = [1, 32], strides = [1, 1]} : vector<1x128xf32> to vector<1x32xf32>
    %98 = vector.extract_strided_slice %95 {offsets = [0, 96], sizes = [1, 32], strides = [1, 1]} : vector<1x128xf32> to vector<1x32xf32>
    %99 = vector.extract_strided_slice %90 {offsets = [0, 64], sizes = [1, 32], strides = [1, 1]} : vector<1x128xf32> to vector<1x32xf32>
    %100 = math.tanh %99 : vector<1x32xf32>
    %101 = arith.mulf %97, %78 : vector<1x32xf32>
    %102 = arith.mulf %96, %100 : vector<1x32xf32>
    %103 = arith.addf %101, %102 : vector<1x32xf32>
    %104 = math.tanh %103 : vector<1x32xf32>
    %105 = arith.mulf %98, %104 : vector<1x32xf32>
    %106 = vector.broadcast %105 : vector<1x32xf32> to vector<32x32xf32>
    %107 = arith.mulf %13, %106 : vector<32x32xf32>
    %cst_18 = arith.constant dense<0.000000e+00> : vector<32xf32>
    %108 = vector.multi_reduction <add>, %107, %cst_18 [1] : vector<32x32xf32> to vector<32xf32>
    %109 = vector.shape_cast %108 : vector<32xf32> to vector<32x1xf32>
    %110 = vector.broadcast %109 : vector<32x1xf32> to vector<32x128xf32>
    %111 = arith.mulf %110, %1 : vector<32x128xf32>
    %cst_19 = arith.constant dense<0.000000e+00> : vector<128xf32>
    %112 = vector.multi_reduction <add>, %111, %cst_19 [0] : vector<32x128xf32> to vector<128xf32>
    %113 = vector.shape_cast %112 : vector<128xf32> to vector<1x128xf32>
    %114 = vector.extract_strided_slice %8 {offsets = [4, 0], sizes = [1, 128], strides = [1, 1]} : vector<8x128xf32> to vector<1x128xf32>
    %115 = arith.addf %114, %113 : vector<1x128xf32>
    %116 = arith.negf %115 : vector<1x128xf32>
    %117 = math.exp %116 : vector<1x128xf32>
    %cst_20 = arith.constant 1.000000e+00 : f32
    %118 = vector.broadcast %cst_20 : f32 to vector<1x128xf32>
    %119 = arith.addf %118, %117 : vector<1x128xf32>
    %120 = arith.divf %118, %119 : vector<1x128xf32>
    %121 = vector.extract_strided_slice %120 {offsets = [0, 0], sizes = [1, 32], strides = [1, 1]} : vector<1x128xf32> to vector<1x32xf32>
    %122 = vector.extract_strided_slice %120 {offsets = [0, 32], sizes = [1, 32], strides = [1, 1]} : vector<1x128xf32> to vector<1x32xf32>
    %123 = vector.extract_strided_slice %120 {offsets = [0, 96], sizes = [1, 32], strides = [1, 1]} : vector<1x128xf32> to vector<1x32xf32>
    %124 = vector.extract_strided_slice %115 {offsets = [0, 64], sizes = [1, 32], strides = [1, 1]} : vector<1x128xf32> to vector<1x32xf32>
    %125 = math.tanh %124 : vector<1x32xf32>
    %126 = arith.mulf %122, %103 : vector<1x32xf32>
    %127 = arith.mulf %121, %125 : vector<1x32xf32>
    %128 = arith.addf %126, %127 : vector<1x32xf32>
    %129 = math.tanh %128 : vector<1x32xf32>
    %130 = arith.mulf %123, %129 : vector<1x32xf32>
    %131 = vector.broadcast %130 : vector<1x32xf32> to vector<32x32xf32>
    %132 = arith.mulf %13, %131 : vector<32x32xf32>
    %cst_21 = arith.constant dense<0.000000e+00> : vector<32xf32>
    %133 = vector.multi_reduction <add>, %132, %cst_21 [1] : vector<32x32xf32> to vector<32xf32>
    %134 = vector.shape_cast %133 : vector<32xf32> to vector<32x1xf32>
    %135 = vector.broadcast %134 : vector<32x1xf32> to vector<32x128xf32>
    %136 = arith.mulf %135, %1 : vector<32x128xf32>
    %cst_22 = arith.constant dense<0.000000e+00> : vector<128xf32>
    %137 = vector.multi_reduction <add>, %136, %cst_22 [0] : vector<32x128xf32> to vector<128xf32>
    %138 = vector.shape_cast %137 : vector<128xf32> to vector<1x128xf32>
    %139 = vector.extract_strided_slice %8 {offsets = [5, 0], sizes = [1, 128], strides = [1, 1]} : vector<8x128xf32> to vector<1x128xf32>
    %140 = arith.addf %139, %138 : vector<1x128xf32>
    %141 = arith.negf %140 : vector<1x128xf32>
    %142 = math.exp %141 : vector<1x128xf32>
    %cst_23 = arith.constant 1.000000e+00 : f32
    %143 = vector.broadcast %cst_23 : f32 to vector<1x128xf32>
    %144 = arith.addf %143, %142 : vector<1x128xf32>
    %145 = arith.divf %143, %144 : vector<1x128xf32>
    %146 = vector.extract_strided_slice %145 {offsets = [0, 0], sizes = [1, 32], strides = [1, 1]} : vector<1x128xf32> to vector<1x32xf32>
    %147 = vector.extract_strided_slice %145 {offsets = [0, 32], sizes = [1, 32], strides = [1, 1]} : vector<1x128xf32> to vector<1x32xf32>
    %148 = vector.extract_strided_slice %145 {offsets = [0, 96], sizes = [1, 32], strides = [1, 1]} : vector<1x128xf32> to vector<1x32xf32>
    %149 = vector.extract_strided_slice %140 {offsets = [0, 64], sizes = [1, 32], strides = [1, 1]} : vector<1x128xf32> to vector<1x32xf32>
    %150 = math.tanh %149 : vector<1x32xf32>
    %151 = arith.mulf %147, %128 : vector<1x32xf32>
    %152 = arith.mulf %146, %150 : vector<1x32xf32>
    %153 = arith.addf %151, %152 : vector<1x32xf32>
    %154 = math.tanh %153 : vector<1x32xf32>
    %155 = arith.mulf %148, %154 : vector<1x32xf32>
    %156 = vector.broadcast %155 : vector<1x32xf32> to vector<32x32xf32>
    %157 = arith.mulf %13, %156 : vector<32x32xf32>
    %cst_24 = arith.constant dense<0.000000e+00> : vector<32xf32>
    %158 = vector.multi_reduction <add>, %157, %cst_24 [1] : vector<32x32xf32> to vector<32xf32>
    %159 = vector.shape_cast %158 : vector<32xf32> to vector<32x1xf32>
    %160 = vector.broadcast %159 : vector<32x1xf32> to vector<32x128xf32>
    %161 = arith.mulf %160, %1 : vector<32x128xf32>
    %cst_25 = arith.constant dense<0.000000e+00> : vector<128xf32>
    %162 = vector.multi_reduction <add>, %161, %cst_25 [0] : vector<32x128xf32> to vector<128xf32>
    %163 = vector.shape_cast %162 : vector<128xf32> to vector<1x128xf32>
    %164 = vector.extract_strided_slice %8 {offsets = [6, 0], sizes = [1, 128], strides = [1, 1]} : vector<8x128xf32> to vector<1x128xf32>
    %165 = arith.addf %164, %163 : vector<1x128xf32>
    %166 = arith.negf %165 : vector<1x128xf32>
    %167 = math.exp %166 : vector<1x128xf32>
    %cst_26 = arith.constant 1.000000e+00 : f32
    %168 = vector.broadcast %cst_26 : f32 to vector<1x128xf32>
    %169 = arith.addf %168, %167 : vector<1x128xf32>
    %170 = arith.divf %168, %169 : vector<1x128xf32>
    %171 = vector.extract_strided_slice %170 {offsets = [0, 0], sizes = [1, 32], strides = [1, 1]} : vector<1x128xf32> to vector<1x32xf32>
    %172 = vector.extract_strided_slice %170 {offsets = [0, 32], sizes = [1, 32], strides = [1, 1]} : vector<1x128xf32> to vector<1x32xf32>
    %173 = vector.extract_strided_slice %170 {offsets = [0, 96], sizes = [1, 32], strides = [1, 1]} : vector<1x128xf32> to vector<1x32xf32>
    %174 = vector.extract_strided_slice %165 {offsets = [0, 64], sizes = [1, 32], strides = [1, 1]} : vector<1x128xf32> to vector<1x32xf32>
    %175 = math.tanh %174 : vector<1x32xf32>
    %176 = arith.mulf %172, %153 : vector<1x32xf32>
    %177 = arith.mulf %171, %175 : vector<1x32xf32>
    %178 = arith.addf %176, %177 : vector<1x32xf32>
    %179 = math.tanh %178 : vector<1x32xf32>
    %180 = arith.mulf %173, %179 : vector<1x32xf32>
    %181 = vector.broadcast %180 : vector<1x32xf32> to vector<32x32xf32>
    %182 = arith.mulf %13, %181 : vector<32x32xf32>
    %cst_27 = arith.constant dense<0.000000e+00> : vector<32xf32>
    %183 = vector.multi_reduction <add>, %182, %cst_27 [1] : vector<32x32xf32> to vector<32xf32>
    %184 = vector.shape_cast %183 : vector<32xf32> to vector<32x1xf32>
    %185 = vector.broadcast %184 : vector<32x1xf32> to vector<32x128xf32>
    %186 = arith.mulf %185, %1 : vector<32x128xf32>
    %cst_28 = arith.constant dense<0.000000e+00> : vector<128xf32>
    %187 = vector.multi_reduction <add>, %186, %cst_28 [0] : vector<32x128xf32> to vector<128xf32>
    %188 = vector.shape_cast %187 : vector<128xf32> to vector<1x128xf32>
    %189 = vector.extract_strided_slice %8 {offsets = [7, 0], sizes = [1, 128], strides = [1, 1]} : vector<8x128xf32> to vector<1x128xf32>
    %190 = arith.addf %189, %188 : vector<1x128xf32>
    %191 = arith.negf %190 : vector<1x128xf32>
    %192 = math.exp %191 : vector<1x128xf32>
    %cst_29 = arith.constant 1.000000e+00 : f32
    %193 = vector.broadcast %cst_29 : f32 to vector<1x128xf32>
    %194 = arith.addf %193, %192 : vector<1x128xf32>
    %195 = arith.divf %193, %194 : vector<1x128xf32>
    %196 = vector.extract_strided_slice %195 {offsets = [0, 0], sizes = [1, 32], strides = [1, 1]} : vector<1x128xf32> to vector<1x32xf32>
    %197 = vector.extract_strided_slice %195 {offsets = [0, 32], sizes = [1, 32], strides = [1, 1]} : vector<1x128xf32> to vector<1x32xf32>
    %198 = vector.extract_strided_slice %195 {offsets = [0, 96], sizes = [1, 32], strides = [1, 1]} : vector<1x128xf32> to vector<1x32xf32>
    %199 = vector.extract_strided_slice %190 {offsets = [0, 64], sizes = [1, 32], strides = [1, 1]} : vector<1x128xf32> to vector<1x32xf32>
    %200 = math.tanh %199 : vector<1x32xf32>
    %201 = arith.mulf %197, %178 : vector<1x32xf32>
    %202 = arith.mulf %196, %200 : vector<1x32xf32>
    %203 = arith.addf %201, %202 : vector<1x32xf32>
    %204 = math.tanh %203 : vector<1x32xf32>
    %205 = arith.mulf %198, %204 : vector<1x32xf32>
    %206 = vector.broadcast %205 : vector<1x32xf32> to vector<32x32xf32>
    %207 = arith.mulf %13, %206 : vector<32x32xf32>
    %cst_30 = arith.constant dense<0.000000e+00> : vector<32xf32>
    %208 = vector.multi_reduction <add>, %207, %cst_30 [1] : vector<32x32xf32> to vector<32xf32>
    %209 = vector.shape_cast %208 : vector<32xf32> to vector<32x1xf32>
    %210 = vector.broadcast %209 : vector<32x1xf32> to vector<32x128xf32>
    %211 = arith.mulf %210, %3 : vector<32x128xf32>
    %cst_31 = arith.constant dense<0.000000e+00> : vector<128xf32>
    %212 = vector.multi_reduction <add>, %211, %cst_31 [0] : vector<32x128xf32> to vector<128xf32>
    %213 = vector.shape_cast %212 : vector<128xf32> to vector<1x128xf32>
    %214 = arith.addf %213, %4 : vector<1x128xf32>
    %215 = vector.extract_strided_slice %214 {offsets = [0, 0], sizes = [1, 4], strides = [1, 1]} : vector<1x128xf32> to vector<1x4xf32>
    %cst_32 = arith.constant dense<0xFF800000> : vector<1xf32>
    %216 = vector.multi_reduction <maximumf>, %215, %cst_32 [1] : vector<1x4xf32> to vector<1xf32>
    %217 = vector.shape_cast %216 : vector<1xf32> to vector<1x1xf32>
    %218 = vector.broadcast %217 : vector<1x1xf32> to vector<1x4xf32>
    %219 = arith.subf %215, %218 : vector<1x4xf32>
    %220 = math.exp %219 : vector<1x4xf32>
    %cst_33 = arith.constant dense<0.000000e+00> : vector<1xf32>
    %221 = vector.multi_reduction <add>, %220, %cst_33 [1] : vector<1x4xf32> to vector<1xf32>
    %222 = vector.shape_cast %221 : vector<1xf32> to vector<1x1xf32>
    %223 = math.log %222 : vector<1x1xf32>
    %224 = vector.broadcast %223 : vector<1x1xf32> to vector<1x4xf32>
    %225 = arith.subf %219, %224 : vector<1x4xf32>
    %c0_34 = arith.constant 0 : index
    %c0_35 = arith.constant 0 : index
    %226 = vector.load %arg2[%c0_34, %c0_35] : memref<1x4xf32, #tpu.memory_space<vmem>>, vector<1x4xf32>
    tpu.vector_store %arg2[%c0_34, %c0_35], %225 {strides = array<i32>} : memref<1x4xf32, #tpu.memory_space<vmem>>, vector<1x4xf32>,
    return
  }
}

</mosaic_0001>

<llo_original>
// kernel: tpu_custom_call.1
$region0: #{tpu_custom_call.1}
  #allocation0 [shape = 'u32[]', space=smem, size = 0x4, offset = 0x4, fixed_abs, tag = 'smem constant byte address 0x4 - core index']
  #allocation1 [shape = 'u32[144,128]{1,0:T(1,128)}', space=vmem, size = 0x12000, scoped, tag = 'internal scratch']
  %s0 = inlined_call_operand.hbm [shape: f32[8,32], index: 0, kind: input, shape index: {}]
  %s1 = inlined_call_operand.hbm [shape: f32[112,128], index: 1, kind: input, shape index: {}]
  %s2 = inlined_call_operand.hbm [shape: f32[1,4], index: 2, kind: output, shape index: {}]
  %s3 = sld [smem:[#allocation0]]
  $region26: #{tpu_custom_call.1} parent=0
    _
  %s5 = ssub.s32 1, %s3
  %s6 = scalar_select 0, %s5, %s3
  $region1: #{tpu_custom_call.1} parent=0
    #allocation2 [shape = 'u8[4096]{0}', space=vmem, size = 0x1000, scoped, tag = 'input window, operand 0, single buffered']
    #allocation3 [shape = 's32[1]{0}', space=sflag, size = 0x4, scoped, tag = 'scoped memory for tpu_custom_call.1']
    #allocation4 [shape = 's32[1]{0}', space=sflag, size = 0x4, scoped, tag = 'scoped memory for tpu_custom_call.1']
    #allocation5 [shape = 'u8[57344]{0}', space=vmem, size = 0xe000, scoped, tag = 'input window, operand 1, single buffered']
    #allocation6 [shape = 's32[1]{0}', space=sflag, size = 0x4, scoped, tag = 'scoped memory for tpu_custom_call.1']
    #allocation7 [shape = 'u8[512]{0}', space=vmem, size = 0x400, scoped, tag = 'output window, operand 0, single buffered']
    %7 = vsyncpa [#allocation3], 0
    %8 = vsyncpa [#allocation6], 0
    %9 = vsyncpa [#allocation4], 0
    // Predicated region
    $region2: #{tpu_custom_call.1} parent=1 // pred_check
      _
    $region3: #{tpu_custom_call.1} parent=1 // pred_check_branch
      %11 = sbr.rel (0) target = $region5
    $region4: #{tpu_custom_call.1} parent=1 // pred_region
      %s13 = ssub.s32 128, 128
      %14 = vsyncadd [#allocation3], %s13
      %s16 = sshll.u32 [#allocation2], 4
      %s17 = int_to_ptr.vmem [resolvable:$true] %s16
      %19 = dma.hbm_to_vmem [thread:$0]  %s0, 128, %s17, [#allocation3]
    $region5: #{tpu_custom_call.1} parent=1 // pred_fallthru
      _
    // Predicated region
    $region6: #{tpu_custom_call.1} parent=1 // pred_check
      _
    $region7: #{tpu_custom_call.1} parent=1 // pred_check_branch
      %21 = sbr.rel (0) target = $region9
    $region8: #{tpu_custom_call.1} parent=1 // pred_region
      %s23 = ssub.s32 1792, 1792
      %24 = vsyncadd [#allocation6], %s23
      %s25 = sshll.u32 [#allocation5], 4
      %s26 = int_to_ptr.vmem [resolvable:$true] %s25
      %31 = dma.hbm_to_vmem [thread:$0]  %s1, 1792, %s26, [#allocation6], 128, 128, 8
    $region9: #{tpu_custom_call.1} parent=1 // pred_fallthru
      _
    // Predicated region
    $region10: #{tpu_custom_call.1} parent=1 // pred_check
      _
    $region11: #{tpu_custom_call.1} parent=1 // pred_check_branch
      %33 = sbr.rel (0) target = $region13
    $region12: #{tpu_custom_call.1} parent=1 // pred_region
      %34 = dma.done [#allocation3], 128
    $region13: #{tpu_custom_call.1} parent=1 // pred_fallthru
      _
    // Predicated region
    $region14: #{tpu_custom_call.1} parent=1 // pred_check
      _
    $region15: #{tpu_custom_call.1} parent=1 // pred_check_branch
      %36 = sbr.rel (0) target = $region17
    $region16: #{tpu_custom_call.1} parent=1 // pred_region
      %37 = dma.done [#allocation6], 1792
    $region17: #{tpu_custom_call.1} parent=1 // pred_fallthru
      _
    %v38 = vld [vmem:[#allocation5] sm:$0xff]
    %v39 = vld [vmem:[#allocation5 + $0x8] sm:$0xff]
    %v40 = vld [vmem:[#allocation5 + $0x10] sm:$0xff]
    %v41 = vld [vmem:[#allocation5 + $0x18] sm:$0xff]
    %v42 = vld [vmem:[#allocation5 + $0x20] sm:$0xff]
    %v43 = vld [vmem:[#allocation5 + $0x28] sm:$0xff]
    %v44 = vld [vmem:[#allocation5 + $0x30] sm:$0xff]
    %v45 = vld [vmem:[#allocation5 + $0x38] sm:$0xff]
    %v46 = vld [vmem:[#allocation5 + $0x40] sm:$0x1]
    %v47 = vld [vmem:[#allocation5 + $0x48] sm:$0xff]
    %v48 = vld [vmem:[#allocation5 + $0x50] sm:$0xff]
    %v49 = vld [vmem:[#allocation5 + $0x58] sm:$0xff]
    %v50 = vld [vmem:[#allocation5 + $0x60] sm:$0xff]
    %v51 = vld [vmem:[#allocation5 + $0x68] sm:$0x1]
    %v52 = vld [vmem:[#allocation2] sm:$0xff]
    %v53 = vlaneseq
    %v54 = vshrl.u32 %v53, 7
    %v55 = vsub.s32 0, %v54
    %v56 = vrot.slane %v46, %v55
    %vm57 = vcmask 261120
    %v59 = vsel %vm57, %v52, 0
    %61 = vmatprep.subr.mxu0 0.0
    %62 = vmatpush1.msra.mxu0 0.0
    %63 = vmatprep.subr.mxu0 0.0
    %64 = vmatpush1.msra.mxu0 0.0
    %65 = vmatprep.subr.mxu0 0.0
    %66 = vmatpush1.msra.mxu0 0.0
    %67 = vmatprep.subr.mxu0 0.0
    %68 = vmatpush1.msra.mxu0 0.0
    %69 = vmatprep.subr.mxu0 0.0
    %70 = vmatpush1.msra.mxu0 0.0
    %71 = vmatprep.subr.mxu0 0.0
    %72 = vmatpush1.msra.mxu0 0.0
    %73 = vmatprep.subr.mxu0 0.0
    %74 = vmatpush1.msra.mxu0 0.0
    %75 = vmatprep.subr.mxu0 0.0
    %76 = vmatpush1.msra.mxu0 0.0
    %77 = vmatprep.subr.mxu0 0.0
    %78 = vmatpush1.msra.mxu0 0.0
    %79 = vmatprep.subr.mxu0 0.0
    %80 = vmatpush1.msra.mxu0 0.0
    %81 = vmatprep.subr.mxu0 0.0
    %82 = vmatpush1.msra.mxu0 0.0
    %83 = vmatprep.subr.mxu0 0.0
    %84 = vmatpush1.msra.mxu0 0.0
    %85 = vmatprep.subr.mxu0 0.0
    %86 = vmatpush1.msra.mxu0 %v41
    %87 = vmatprep.subr.mxu0 0.0
    %88 = vmatpush1.msra.mxu0 %v40
    %89 = vmatprep.subr.mxu0 0.0
    %90 = vmatpush1.msra.mxu0 %v39
    %91 = vmatprep.subr.mxu0 0.0
    %92 = vmatpush1.msra.mxu0 %v38
    %93 = vmatprep.subr.mxu0 0.0
    %94 = vmatpush2.msra.mxu0 0.0
    %95 = vmatprep.subr.mxu0 0.0
    %96 = vmatpush2.msra.mxu0 0.0
    %97 = vmatprep.subr.mxu0 0.0
    %98 = vmatpush2.msra.mxu0 0.0
    %99 = vmatprep.subr.mxu0 0.0
    %100 = vmatpush2.msra.mxu0 0.0
    %101 = vmatprep.subr.mxu0 0.0
    %102 = vmatpush2.msra.mxu0 0.0
    %103 = vmatprep.subr.mxu0 0.0
    %104 = vmatpush2.msra.mxu0 0.0
    %105 = vmatprep.subr.mxu0 0.0
    %106 = vmatpush2.msra.mxu0 0.0
    %107 = vmatprep.subr.mxu0 0.0
    %108 = vmatpush2.msra.mxu0 0.0
    %109 = vmatprep.subr.mxu0 0.0
    %110 = vmatpush2.msra.mxu0 0.0
    %111 = vmatprep.subr.mxu0 0.0
    %112 = vmatpush2.msra.mxu0 0.0
    %113 = vmatprep.subr.mxu0 0.0
    %114 = vmatpush2.msra.mxu0 0.0
    %115 = vmatprep.subr.mxu0 0.0
    %116 = vmatpush2.msra.mxu0 0.0
    %117 = vmatprep.subr.mxu0 0.0
    %118 = vmatpush2.msra.mxu0 0.0
    %119 = vmatprep.subr.mxu0 0.0
    %120 = vmatpush2.msra.mxu0 0.0
    %121 = vmatprep.subr.mxu0 0.0
    %122 = vmatpush2.msra.mxu0 0.0
    %123 = vmatprep.subr.mxu0 0.0
    %124 = vmatpush2.msra.mxu0 0.0
    %125 = vmatprep.mubr.f32.mxu0 0.0
    %126 = vmatmul.mubr.f32.gmra.mxu0 %v59
    %v127 = vpop.f32.mrf.mxu0
    %v128 = vadd.f32 %v56, %v127
    %v129 = vpop.f32.mrf.mxu0
    %130 = vdwg.mxu0
    %v131 = vlaneseq
    %v132 = vshrl.u32 %v131, 7
    %v133 = vadd.s32 %v132, 8
    %v134 = vadd.s32 %v132, 16
    %v135 = vadd.s32 %v132, 24
    %v136 = vlaneseq
    %v137 = vand.u32 %v136, 127
    %vm138 = vcmp.eq.s32.totalorder %v132, %v137
    %vm139 = vcmp.eq.s32.totalorder %v133, %v137
    %vm140 = vcmp.eq.s32.totalorder %v134, %v137
    %vm141 = vcmp.eq.s32.totalorder %v135, %v137
    %v142 = vsel %vm138, 1, 0
    %v143 = vsel %vm139, 1, 0
    %v144 = vsel %vm140, 1, 0
    %v145 = vsel %vm141, 1, 0
    %v146 = vcvt.s32.f32 %v142
    %v147 = vcvt.s32.f32 %v143
    %v148 = vcvt.s32.f32 %v144
    %v149 = vcvt.s32.f32 %v145
    %v150 = vxor.u32 %v128, 2147483648
    %v151 = vmul.f32 %v150, 1.442695
    %v152 = vpow.pop %v151
    %v153 = vadd.f32 %v152, 1.0
    %v154 = vrcp.pop %v153
    %v155 = vmul.f32 1.0, %v154
    %v156 = vtanh.pop %v128
    %v157 = vmul.f32 %v155, 0.0
    %159 = vrot.lane.b32.xlu0 %v156, 64
    %v160 = vpop.permute.xlu0 %159
    %v162 = vmul.f32 %v155, %v160
    %164 = vrot.lane.b32.xlu0 %v162, 32
    %v165 = vpop.permute.xlu0 %164
    %v167 = vadd.f32 %v157, %v165
    %v168 = vtanh.pop %v167
    %170 = vrot.lane.b32.xlu0 %v168, 64
    %v171 = vpop.permute.xlu0 %170
    %v173 = vmul.f32 %v155, %v171
    %v174 = vlaneseq
    %v175 = vshrl.u32 %v174, 7
    %v176 = vsub.s32 0, %v175
    %v177 = vrot.slane %v173, %v176
    %179 = vrot.lane.b32.xlu0 %v177, 32
    %v180 = vpop.permute.xlu0 %179
    %v182 = vmul.f32 %v146, %v180
    %v183 = vmul.f32 %v147, %v180
    %v184 = vmul.f32 %v148, %v180
    %v185 = vmul.f32 %v149, %v180
    %v186 = vsel %vm57, %v182, 0.0
    %187 = vadd.xlane.f32.xlu0 %v186
    %v188 = vpop.xlane.xlu0 %187
    %v189 = vsel %vm57, %v183, 0.0
    %190 = vadd.xlane.f32.xlu0 %v189
    %v191 = vpop.xlane.xlu0 %190
    %v192 = vsel %vm57, %v184, 0.0
    %193 = vadd.xlane.f32.xlu0 %v192
    %v194 = vpop.xlane.xlu0 %193
    %v195 = vsel %vm57, %v185, 0.0
    %196 = vadd.xlane.f32.xlu0 %v195
    %v197 = vpop.xlane.xlu0 %196
    %v198 = vmul.f32 %v188, %v42
    %v199 = vmul.f32 %v191, %v43
    %v200 = vmul.f32 %v194, %v44
    %v201 = vmul.f32 %v197, %v45
    %v202 = vadd.f32 %v198, %v199
    %v203 = vadd.f32 %v202, %v200
    %v204 = vadd.f32 %v203, %v201
    %v205 = vrot.slane %v204, 4
    %v206 = vadd.f32 %v204, %v205
    %v207 = vrot.slane %v206, 2
    %v208 = vadd.f32 %v206, %v207
    %v209 = vrot.slane %v208, 1
    %v210 = vadd.f32 %v208, %v209
    %v211 = vadd.f32 %v128, %v210
    %v212 = vxor.u32 %v211, 2147483648
    %v213 = vmul.f32 %v212, 1.442695
    %v214 = vpow.pop %v213
    %v215 = vadd.f32 %v214, 1.0
    %v216 = vrcp.pop %v215
    %v217 = vmul.f32 1.0, %v216
    %v218 = vtanh.pop %v211
    %v220 = vrot.slane %v167, 7
    %v222 = vmul.f32 %v217, %v220
    %224 = vrot.lane.b32.xlu0 %v218, 64
    %v225 = vpop.permute.xlu0 %224
    %v227 = vmul.f32 %v217, %v225
    %229 = vrot.lane.b32.xlu0 %v227, 32
    %v230 = vpop.permute.xlu0 %229
    %v232 = vadd.f32 %v222, %v230
    %v233 = vtanh.pop %v232
    %235 = vrot.lane.b32.xlu0 %v233, 64
    %v236 = vpop.permute.xlu0 %235
    %v238 = vmul.f32 %v217, %v236
    %v239 = vlaneseq
    %v240 = vshrl.u32 %v239, 7
    %v241 = vsub.s32 1, %v240
    %v242 = vrot.slane %v238, %v241
    %244 = vrot.lane.b32.xlu0 %v242, 32
    %v245 = vpop.permute.xlu0 %244
    %v247 = vmul.f32 %v146, %v245
    %v248 = vmul.f32 %v147, %v245
    %v249 = vmul.f32 %v148, %v245
    %v250 = vmul.f32 %v149, %v245
    %v251 = vsel %vm57, %v247, 0.0
    %252 = vadd.xlane.f32.xlu0 %v251
    %v253 = vpop.xlane.xlu0 %252
    %v254 = vsel %vm57, %v248, 0.0
    %255 = vadd.xlane.f32.xlu0 %v254
    %v256 = vpop.xlane.xlu0 %255
    %v257 = vsel %vm57, %v249, 0.0
    %258 = vadd.xlane.f32.xlu0 %v257
    %v259 = vpop.xlane.xlu0 %258
    %v260 = vsel %vm57, %v250, 0.0
    %261 = vadd.xlane.f32.xlu0 %v260
    %v262 = vpop.xlane.xlu0 %261
    %v263 = vmul.f32 %v253, %v42
    %v264 = vmul.f32 %v256, %v43
    %v265 = vmul.f32 %v259, %v44
    %v266 = vmul.f32 %v262, %v45
    %v267 = vadd.f32 %v263, %v264
    %v268 = vadd.f32 %v267, %v265
    %v269 = vadd.f32 %v268, %v266
    %v270 = vrot.slane %v269, 4
    %v271 = vadd.f32 %v269, %v270
    %v272 = vrot.slane %v271, 2
    %v273 = vadd.f32 %v271, %v272
    %v274 = vrot.slane %v273, 1
    %v275 = vadd.f32 %v273, %v274
    %v276 = vadd.f32 %v128, %v275
    %v277 = vxor.u32 %v276, 2147483648
    %v278 = vmul.f32 %v277, 1.442695
    %v279 = vpow.pop %v278
    %v280 = vadd.f32 %v279, 1.0
    %v281 = vrcp.pop %v280
    %v282 = vmul.f32 1.0, %v281
    %v283 = vtanh.pop %v276
    %v285 = vrot.slane %v232, 7
    %v287 = vmul.f32 %v282, %v285
    %289 = vrot.lane.b32.xlu0 %v283, 64
    %v290 = vpop.permute.xlu0 %289
    %v292 = vmul.f32 %v282, %v290
    %294 = vrot.lane.b32.xlu0 %v292, 32
    %v295 = vpop.permute.xlu0 %294
    %v297 = vadd.f32 %v287, %v295
    %v298 = vtanh.pop %v297
    %300 = vrot.lane.b32.xlu0 %v298, 64
    %v301 = vpop.permute.xlu0 %300
    %v303 = vmul.f32 %v282, %v301
    %v304 = vlaneseq
    %v305 = vshrl.u32 %v304, 7
    %v306 = vsub.s32 2, %v305
    %v307 = vrot.slane %v303, %v306
    %309 = vrot.lane.b32.xlu0 %v307, 32
    %v310 = vpop.permute.xlu0 %309
    %v312 = vmul.f32 %v146, %v310
    %v313 = vmul.f32 %v147, %v310
    %v314 = vmul.f32 %v148, %v310
    %v315 = vmul.f32 %v149, %v310
    %v316 = vsel %vm57, %v312, 0.0
    %317 = vadd.xlane.f32.xlu0 %v316
    %v318 = vpop.xlane.xlu0 %317
    %v319 = vsel %vm57, %v313, 0.0
    %320 = vadd.xlane.f32.xlu0 %v319
    %v321 = vpop.xlane.xlu0 %320
    %v322 = vsel %vm57, %v314, 0.0
    %323 = vadd.xlane.f32.xlu0 %v322
    %v324 = vpop.xlane.xlu0 %323
    %v325 = vsel %vm57, %v315, 0.0
    %326 = vadd.xlane.f32.xlu0 %v325
    %v327 = vpop.xlane.xlu0 %326
    %v328 = vmul.f32 %v318, %v42
    %v329 = vmul.f32 %v321, %v43
    %v330 = vmul.f32 %v324, %v44
    %v331 = vmul.f32 %v327, %v45
    %v332 = vadd.f32 %v328, %v329
    %v333 = vadd.f32 %v332, %v330
    %v334 = vadd.f32 %v333, %v331
    %v335 = vrot.slane %v334, 4
    %v336 = vadd.f32 %v334, %v335
    %v337 = vrot.slane %v336, 2
    %v338 = vadd.f32 %v336, %v337
    %v339 = vrot.slane %v338, 1
    %v340 = vadd.f32 %v338, %v339
    %v341 = vadd.f32 %v128, %v340
    %v342 = vxor.u32 %v341, 2147483648
    %v343 = vmul.f32 %v342, 1.442695
    %v344 = vpow.pop %v343
    %v345 = vadd.f32 %v344, 1.0
    %v346 = vrcp.pop %v345
    %v347 = vmul.f32 1.0, %v346
    %v348 = vtanh.pop %v341
    %v350 = vrot.slane %v297, 7
    %v352 = vmul.f32 %v347, %v350
    %354 = vrot.lane.b32.xlu0 %v348, 64
    %v355 = vpop.permute.xlu0 %354
    %v357 = vmul.f32 %v347, %v355
    %359 = vrot.lane.b32.xlu0 %v357, 32
    %v360 = vpop.permute.xlu0 %359
    %v362 = vadd.f32 %v352, %v360
    %v363 = vtanh.pop %v362
    %365 = vrot.lane.b32.xlu0 %v363, 64
    %v366 = vpop.permute.xlu0 %365
    %v368 = vmul.f32 %v347, %v366
    %v369 = vlaneseq
    %v370 = vshrl.u32 %v369, 7
    %v371 = vsub.s32 3, %v370
    %v372 = vrot.slane %v368, %v371
    %374 = vrot.lane.b32.xlu0 %v372, 32
    %v375 = vpop.permute.xlu0 %374
    %v377 = vmul.f32 %v146, %v375
    %v378 = vmul.f32 %v147, %v375
    %v379 = vmul.f32 %v148, %v375
    %v380 = vmul.f32 %v149, %v375
    %v381 = vsel %vm57, %v377, 0.0
    %382 = vadd.xlane.f32.xlu0 %v381
    %v383 = vpop.xlane.xlu0 %382
    %v384 = vsel %vm57, %v378, 0.0
    %385 = vadd.xlane.f32.xlu0 %v384
    %v386 = vpop.xlane.xlu0 %385
    %v387 = vsel %vm57, %v379, 0.0
    %388 = vadd.xlane.f32.xlu0 %v387
    %v389 = vpop.xlane.xlu0 %388
    %v390 = vsel %vm57, %v380, 0.0
    %391 = vadd.xlane.f32.xlu0 %v390
    %v392 = vpop.xlane.xlu0 %391
    %v393 = vmul.f32 %v383, %v42
    %v394 = vmul.f32 %v386, %v43
    %v395 = vmul.f32 %v389, %v44
    %v396 = vmul.f32 %v392, %v45
    %v397 = vadd.f32 %v393, %v394
    %v398 = vadd.f32 %v397, %v395
    %v399 = vadd.f32 %v398, %v396
    %v400 = vrot.slane %v399, 4
    %v401 = vadd.f32 %v399, %v400
    %v402 = vrot.slane %v401, 2
    %v403 = vadd.f32 %v401, %v402
    %v404 = vrot.slane %v403, 1
    %v405 = vadd.f32 %v403, %v404
    %v406 = vadd.f32 %v128, %v405
    %v407 = vxor.u32 %v406, 2147483648
    %v408 = vmul.f32 %v407, 1.442695
    %v409 = vpow.pop %v408
    %v410 = vadd.f32 %v409, 1.0
    %v411 = vrcp.pop %v410
    %v412 = vmul.f32 1.0, %v411
    %v413 = vtanh.pop %v406
    %v415 = vrot.slane %v362, 7
    %v417 = vmul.f32 %v412, %v415
    %419 = vrot.lane.b32.xlu0 %v413, 64
    %v420 = vpop.permute.xlu0 %419
    %v422 = vmul.f32 %v412, %v420
    %424 = vrot.lane.b32.xlu0 %v422, 32
    %v425 = vpop.permute.xlu0 %424
    %v427 = vadd.f32 %v417, %v425
    %v428 = vtanh.pop %v427
    %430 = vrot.lane.b32.xlu0 %v428, 64
    %v431 = vpop.permute.xlu0 %430
    %v433 = vmul.f32 %v412, %v431
    %v434 = vlaneseq
    %v435 = vshrl.u32 %v434, 7
    %v436 = vsub.s32 4, %v435
    %v437 = vrot.slane %v433, %v436
    %439 = vrot.lane.b32.xlu0 %v437, 32
    %v440 = vpop.permute.xlu0 %439
    %v442 = vmul.f32 %v146, %v440
    %v443 = vmul.f32 %v147, %v440
    %v444 = vmul.f32 %v148, %v440
    %v445 = vmul.f32 %v149, %v440
    %v446 = vsel %vm57, %v442, 0.0
    %447 = vadd.xlane.f32.xlu0 %v446
    %v448 = vpop.xlane.xlu0 %447
    %v449 = vsel %vm57, %v443, 0.0
    %450 = vadd.xlane.f32.xlu0 %v449
    %v451 = vpop.xlane.xlu0 %450
    %v452 = vsel %vm57, %v444, 0.0
    %453 = vadd.xlane.f32.xlu0 %v452
    %v454 = vpop.xlane.xlu0 %453
    %v455 = vsel %vm57, %v445, 0.0
    %456 = vadd.xlane.f32.xlu0 %v455
    %v457 = vpop.xlane.xlu0 %456
    %v458 = vmul.f32 %v448, %v42
    %v459 = vmul.f32 %v451, %v43
    %v460 = vmul.f32 %v454, %v44
    %v461 = vmul.f32 %v457, %v45
    %v462 = vadd.f32 %v458, %v459
    %v463 = vadd.f32 %v462, %v460
    %v464 = vadd.f32 %v463, %v461
    %v465 = vrot.slane %v464, 4
    %v466 = vadd.f32 %v464, %v465
    %v467 = vrot.slane %v466, 2
    %v468 = vadd.f32 %v466, %v467
    %v469 = vrot.slane %v468, 1
    %v470 = vadd.f32 %v468, %v469
    %v471 = vadd.f32 %v128, %v470
    %v472 = vxor.u32 %v471, 2147483648
    %v473 = vmul.f32 %v472, 1.442695
    %v474 = vpow.pop %v473
    %v475 = vadd.f32 %v474, 1.0
    %v476 = vrcp.pop %v475
    %v477 = vmul.f32 1.0, %v476
    %v478 = vtanh.pop %v471
    %v480 = vrot.slane %v427, 7
    %v482 = vmul.f32 %v477, %v480
    %484 = vrot.lane.b32.xlu0 %v478, 64
    %v485 = vpop.permute.xlu0 %484
    %v487 = vmul.f32 %v477, %v485
    %489 = vrot.lane.b32.xlu0 %v487, 32
    %v490 = vpop.permute.xlu0 %489
    %v492 = vadd.f32 %v482, %v490
    %v493 = vtanh.pop %v492
    %495 = vrot.lane.b32.xlu0 %v493, 64
    %v496 = vpop.permute.xlu0 %495
    %v498 = vmul.f32 %v477, %v496
    %v499 = vlaneseq
    %v500 = vshrl.u32 %v499, 7
    %v501 = vsub.s32 5, %v500
    %v502 = vrot.slane %v498, %v501
    %504 = vrot.lane.b32.xlu0 %v502, 32
    %v505 = vpop.permute.xlu0 %504
    %v507 = vmul.f32 %v146, %v505
    %v508 = vmul.f32 %v147, %v505
    %v509 = vmul.f32 %v148, %v505
    %v510 = vmul.f32 %v149, %v505
    %v511 = vsel %vm57, %v507, 0.0
    %512 = vadd.xlane.f32.xlu0 %v511
    %v513 = vpop.xlane.xlu0 %512
    %v514 = vsel %vm57, %v508, 0.0
    %515 = vadd.xlane.f32.xlu0 %v514
    %v516 = vpop.xlane.xlu0 %515
    %v517 = vsel %vm57, %v509, 0.0
    %518 = vadd.xlane.f32.xlu0 %v517
    %v519 = vpop.xlane.xlu0 %518
    %v520 = vsel %vm57, %v510, 0.0
    %521 = vadd.xlane.f32.xlu0 %v520
    %v522 = vpop.xlane.xlu0 %521
    %v523 = vmul.f32 %v513, %v42
    %v524 = vmul.f32 %v516, %v43
    %v525 = vmul.f32 %v519, %v44
    %v526 = vmul.f32 %v522, %v45
    %v527 = vadd.f32 %v523, %v524
    %v528 = vadd.f32 %v527, %v525
    %v529 = vadd.f32 %v528, %v526
    %v530 = vrot.slane %v529, 4
    %v531 = vadd.f32 %v529, %v530
    %v532 = vrot.slane %v531, 2
    %v533 = vadd.f32 %v531, %v532
    %v534 = vrot.slane %v533, 1
    %v535 = vadd.f32 %v533, %v534
    %v536 = vadd.f32 %v128, %v535
    %v537 = vxor.u32 %v536, 2147483648
    %v538 = vmul.f32 %v537, 1.442695
    %v539 = vpow.pop %v538
    %v540 = vadd.f32 %v539, 1.0
    %v541 = vrcp.pop %v540
    %v542 = vmul.f32 1.0, %v541
    %v543 = vtanh.pop %v536
    %v545 = vrot.slane %v492, 7
    %v547 = vmul.f32 %v542, %v545
    %549 = vrot.lane.b32.xlu0 %v543, 64
    %v550 = vpop.permute.xlu0 %549
    %v552 = vmul.f32 %v542, %v550
    %554 = vrot.lane.b32.xlu0 %v552, 32
    %v555 = vpop.permute.xlu0 %554
    %v557 = vadd.f32 %v547, %v555
    %v558 = vtanh.pop %v557
    %560 = vrot.lane.b32.xlu0 %v558, 64
    %v561 = vpop.permute.xlu0 %560
    %v563 = vmul.f32 %v542, %v561
    %v564 = vlaneseq
    %v565 = vshrl.u32 %v564, 7
    %v566 = vsub.s32 6, %v565
    %v567 = vrot.slane %v563, %v566
    %569 = vrot.lane.b32.xlu0 %v567, 32
    %v570 = vpop.permute.xlu0 %569
    %v572 = vmul.f32 %v146, %v570
    %v573 = vmul.f32 %v147, %v570
    %v574 = vmul.f32 %v148, %v570
    %v575 = vmul.f32 %v149, %v570
    %v576 = vsel %vm57, %v572, 0.0
    %577 = vadd.xlane.f32.xlu0 %v576
    %v578 = vpop.xlane.xlu0 %577
    %v579 = vsel %vm57, %v573, 0.0
    %580 = vadd.xlane.f32.xlu0 %v579
    %v581 = vpop.xlane.xlu0 %580
    %v582 = vsel %vm57, %v574, 0.0
    %583 = vadd.xlane.f32.xlu0 %v582
    %v584 = vpop.xlane.xlu0 %583
    %v585 = vsel %vm57, %v575, 0.0
    %586 = vadd.xlane.f32.xlu0 %v585
    %v587 = vpop.xlane.xlu0 %586
    %v588 = vmul.f32 %v578, %v42
    %v589 = vmul.f32 %v581, %v43
    %v590 = vmul.f32 %v584, %v44
    %v591 = vmul.f32 %v587, %v45
    %v592 = vadd.f32 %v588, %v589
    %v593 = vadd.f32 %v592, %v590
    %v594 = vadd.f32 %v593, %v591
    %v595 = vrot.slane %v594, 4
    %v596 = vadd.f32 %v594, %v595
    %v597 = vrot.slane %v596, 2
    %v598 = vadd.f32 %v596, %v597
    %v599 = vrot.slane %v598, 1
    %v600 = vadd.f32 %v598, %v599
    %v601 = vadd.f32 %v128, %v600
    %v602 = vxor.u32 %v601, 2147483648
    %v603 = vmul.f32 %v602, 1.442695
    %v604 = vpow.pop %v603
    %v605 = vadd.f32 %v604, 1.0
    %v606 = vrcp.pop %v605
    %v607 = vmul.f32 1.0, %v606
    %v608 = vtanh.pop %v601
    %v610 = vrot.slane %v557, 7
    %v612 = vmul.f32 %v607, %v610
    %614 = vrot.lane.b32.xlu0 %v608, 64
    %v615 = vpop.permute.xlu0 %614
    %v617 = vmul.f32 %v607, %v615
    %619 = vrot.lane.b32.xlu0 %v617, 32
    %v620 = vpop.permute.xlu0 %619
    %v622 = vadd.f32 %v612, %v620
    %v623 = vtanh.pop %v622
    %625 = vrot.lane.b32.xlu0 %v623, 64
    %v626 = vpop.permute.xlu0 %625
    %v628 = vmul.f32 %v607, %v626
    %v629 = vlaneseq
    %v630 = vshrl.u32 %v629, 7
    %v631 = vsub.s32 7, %v630
    %v632 = vrot.slane %v628, %v631
    %634 = vrot.lane.b32.xlu0 %v632, 32
    %v635 = vpop.permute.xlu0 %634
    %v637 = vmul.f32 %v146, %v635
    %v638 = vmul.f32 %v147, %v635
    %v639 = vmul.f32 %v148, %v635
    %v640 = vmul.f32 %v149, %v635
    %v641 = vsel %vm57, %v637, 0.0
    %642 = vadd.xlane.f32.xlu0 %v641
    %v643 = vpop.xlane.xlu0 %642
    %v644 = vsel %vm57, %v638, 0.0
    %645 = vadd.xlane.f32.xlu0 %v644
    %v646 = vpop.xlane.xlu0 %645
    %v647 = vsel %vm57, %v639, 0.0
    %648 = vadd.xlane.f32.xlu0 %v647
    %v649 = vpop.xlane.xlu0 %648
    %v650 = vsel %vm57, %v640, 0.0
    %651 = vadd.xlane.f32.xlu0 %v650
    %v652 = vpop.xlane.xlu0 %651
    %v653 = vmul.f32 %v643, %v47
    %v654 = vmul.f32 %v646, %v48
    %v655 = vmul.f32 %v649, %v49
    %v656 = vmul.f32 %v652, %v50
    %v657 = vadd.f32 %v653, %v654
    %v658 = vadd.f32 %v657, %v655
    %v659 = vadd.f32 %v658, %v656
    %v660 = vrot.slane %v659, 4
    %v661 = vadd.f32 %v659, %v660
    %v662 = vrot.slane %v661, 2
    %v663 = vadd.f32 %v661, %v662
    %v664 = vrot.slane %v663, 1
    %v665 = vadd.f32 %v663, %v664
    %v666 = vadd.f32 %v665, %v51
    %vm667 = vcmask 24576
    %v668 = vsel %vm667, %v666, -inf
    %669 = vmax.xlane.f32.xlu0 %v668
    %v670 = vpop.xlane.xlu0 %669
    %v671 = vsub.f32 %v666, %v670
    %v672 = vmul.f32 %v671, 1.442695
    %v673 = vpow.pop %v672
    %v674 = vsel %vm667, %v673, 0.0
    %675 = vadd.xlane.f32.xlu0 %v674
    %v676 = vpop.xlane.xlu0 %675
    %v677 = vlog2.pop %v676
    %v678 = vmul.f32 %v677, 0.6931472
    %v679 = vsub.f32 %v671, %v678
    %680 = vst.msk [vmem:[#allocation7] sm:$0x1] %vm667, %v679
    // Predicated region
    $region18: #{tpu_custom_call.1} parent=1 // pred_check
      _
    $region19: #{tpu_custom_call.1} parent=1 // pred_check_branch
      %682 = sbr.rel (0) target = $region21
    $region20: #{tpu_custom_call.1} parent=1 // pred_region
      %s684 = ssub.s32 16, 16
      %685 = vsyncadd [#allocation4], %s684
      %s687 = sshll.u32 [#allocation7], 4
      %s688 = int_to_ptr.vmem [resolvable:$true] %s687
      %690 = dma.vmem_to_hbm [thread:$0]  %s688, 16, %s2, [#allocation4]
    $region21: #{tpu_custom_call.1} parent=1 // pred_fallthru
      _
    // Predicated region
    $region22: #{tpu_custom_call.1} parent=1 // pred_check
      _
    $region23: #{tpu_custom_call.1} parent=1 // pred_check_branch
      %692 = sbr.rel (0) target = $region25
    $region24: #{tpu_custom_call.1} parent=1 // pred_region
      %693 = dma.done [#allocation4], 16
    $region25: #{tpu_custom_call.1} parent=1 // pred_fallthru
      _
    %694 = vsyncpa [#allocation3], 1
    %695 = vsyncpa [#allocation6], 1
    %696 = vsyncpa [#allocation4], 1

</llo_original>
